<compile_context>
chip_gen: v7x
topology: tpu7x:2x2x1
jax: 0.10.0
libtpu: 0.0.40
codegen_flags: <defaults>
</compile_context>

<pallas_src>
import math

import numpy as np
import jax
import jax.numpy as jnp
from jax.experimental import pallas as pl
from jax.experimental.pallas import tpu as pltpu


def _sinusoidal_kernel(t_ref, sel_ref, freq_ref, phase_ref, o_ref):
    """One grid step.

    t_ref:     (TB, P)  f32 -- P batch rows packed per output row
    sel_ref:   (P, L)   f32 -- 0/1 selection matrix (exact MXU lane-broadcast)
    freq_ref:  (1, L)   f32 -- [f, f] (sin half / cos half) tiled P times
    phase_ref: (1, L)   f32 -- [0,...,0, pi/2,...,pi/2] tiled P times
    o_ref:     (TB, L)  f32
    """
    # Exact broadcast of each packed time value across its dim-wide lane slot:
    # 0/1 weights + HIGHEST precision keep t bit-exact (no bf16 truncation).
    t_wide = jnp.dot(t_ref[...], sel_ref[...],
                     preferred_element_type=jnp.float32,
                     precision=jax.lax.Precision.HIGHEST)
    # cos(x) == sin(x + pi/2): one EUP push per vreg, one full-width store.
    o_ref[...] = jnp.sin(t_wide * freq_ref[...] + phase_ref[...])


def sinusoidal_position_embeddings(time: jax.Array, dim: int,
                                   block_rows: int = 4096) -> jax.Array:
    """time: (B,) -> (B, dim) float32 sinusoidal embeddings (PyTorch semantics)."""
    assert dim % 2 == 0 and dim >= 4, "dim must be even and >= 4"
    B = time.shape[0]
    half = dim // 2

    # Lane packing factor: put `pack` batch rows side by side along the 128-lane
    # axis so every store is full-width (unmasked vst) instead of dim-wide
    # masked vst.msk.
    pack = 128 // dim if (dim <= 128 and 128 % dim == 0) else 1
    lanes = pack * dim

    # ---- Trace-time constants (passed as kernel INPUTS, never captured) ----
    scale = math.log(10000.0) / (half - 1)
    f = np.exp(np.arange(half, dtype=np.float32) * -np.float32(scale))
    freq_row = np.concatenate([f, f]).astype(np.float32)                 # (dim,)
    phase_row = np.concatenate([np.zeros(half, np.float32),
                                np.full(half, np.pi / 2, np.float32)])   # (dim,)
    freq = np.tile(freq_row, pack)[None, :].astype(np.float32)           # (1, lanes)
    phase = np.tile(phase_row, pack)[None, :].astype(np.float32)         # (1, lanes)
    sel = np.zeros((pack, lanes), np.float32)
    for j in range(pack):
        sel[j, j * dim:(j + 1) * dim] = 1.0                              # (pack, lanes)

    # ---- Row tiling in the packed layout (TB packed rows = TB*pack batch rows)
    rows = pl.cdiv(B, pack)
    tb_cap = max(8, (max(block_rows // pack, 8) // 8) * 8)
    TB = min(tb_cap, ((rows + 7) // 8) * 8)
    rows_p = pl.cdiv(rows, TB) * TB
    Bp = rows_p * pack

    t = time.astype(jnp.float32)
    if Bp != B:
        # NOTE: for production pick B a multiple of pack*8 (e.g. 32 for dim=32)
        # so this pad + trailing slice (extra HBM copy) never triggers.
        t = jnp.pad(t, (0, Bp - B))
    t = t.reshape(rows_p, pack)

    out = pl.pallas_call(
        _sinusoidal_kernel,
        out_shape=jax.ShapeDtypeStruct((rows_p, lanes), jnp.float32),
        grid=(rows_p // TB,),
        in_specs=[
            pl.BlockSpec((TB, pack), lambda i: (i, 0)),
            pl.BlockSpec((pack, lanes), lambda i: (0, 0)),
            pl.BlockSpec((1, lanes), lambda i: (0, 0)),
            pl.BlockSpec((1, lanes), lambda i: (0, 0)),
        ],
        out_specs=pl.BlockSpec((TB, lanes), lambda i: (i, 0)),
        compiler_params=pltpu.CompilerParams(
            dimension_semantics=("parallel",)),  # engages 2nd TC on v7x when grid >= 2
    )(t, jnp.asarray(sel), jnp.asarray(freq), jnp.asarray(phase))

    # Free reshape back to one batch row per output row (contiguous, row-major).
    out = out.reshape(rows_p * pack, dim)
    return out[:B] if Bp != B else out


def _reference(time: jax.Array, dim: int) -> jax.Array:
    half = dim // 2
    emb = math.log(10000.0) / (half - 1)
    emb = jnp.exp(jnp.arange(half, dtype=jnp.float32) * -emb)
    emb = time.astype(jnp.float32)[:, None] * emb[None, :]
    return jnp.concatenate([jnp.sin(emb), jnp.cos(emb)], axis=-1)


if __name__ == "__main__":
    key = jax.random.PRNGKey(0)
    B, DIM = 8, 32
    # diffusion timesteps: positive floats up to ~1000
    time = jax.random.uniform(key, (B,), dtype=jnp.float32, minval=0.0, maxval=1000.0)

    out = sinusoidal_position_embeddings(time, DIM)
    out = jax.block_until_ready(out)

    ref = _reference(time, DIM)
    assert out.shape == (B, DIM), out.shape
    # cos(x)=sin(x+pi/2) with args up to ~1000 perturbs the f32 argument by
    # ~ulp(1000)/2 (~3e-5 rad), so allow atol=1e-3; layout/frequency bugs would
    # show up as O(1) errors.
    assert jnp.allclose(out, ref, atol=1e-3, rtol=0.0), \
        float(jnp.max(jnp.abs(out - ref)))

    print("KERNEL_OK")
</pallas_src>

<mosaic_0001>
module attributes {stable_mosaic.version = 11 : i64} {
  func.func @_sinusoidal_kernel(%arg0: i32, %arg1: memref<8x4xf32, #tpu.memory_space<vmem>>, %arg2: memref<4x128xf32, #tpu.memory_space<vmem>>, %arg3: memref<1x128xf32, #tpu.memory_space<vmem>>, %arg4: memref<1x128xf32, #tpu.memory_space<vmem>>, %arg5: memref<8x128xf32, #tpu.memory_space<vmem>>) attributes {dimension_semantics = [#tpu.dimension_semantics<parallel>], iteration_bounds = array<i64: 1>, scalar_prefetch = 0 : i64, scratch_operands = 0 : i64, tpu.core_type = #tpu.core_type<tc>, window_params = [{transform_indices = @transform_0, window_bounds = array<i64: 8, 4>}, {pipeline_mode = #tpu.pipeline_mode<synchronous>, transform_indices = @transform_1, window_bounds = array<i64: 4, 128>}, {pipeline_mode = #tpu.pipeline_mode<synchronous>, transform_indices = @transform_2, window_bounds = array<i64: 1, 128>}, {pipeline_mode = #tpu.pipeline_mode<synchronous>, transform_indices = @transform_3, window_bounds = array<i64: 1, 128>}, {transform_indices = @transform_4, window_bounds = array<i64: 8, 128>}]} {
    %c0 = arith.constant 0 : index
    %c0_0 = arith.constant 0 : index
    %0 = vector.load %arg1[%c0, %c0_0] : memref<8x4xf32, #tpu.memory_space<vmem>>, vector<8x4xf32>
    %c0_1 = arith.constant 0 : index
    %c0_2 = arith.constant 0 : index
    %1 = vector.load %arg2[%c0_1, %c0_2] : memref<4x128xf32, #tpu.memory_space<vmem>>, vector<4x128xf32>
    %cst = arith.constant dense<0.000000e+00> : vector<8x128xf32>
    %2 = tpu.matmul %0, %1, %cst {dimension_numbers = #tpu.dot_dimension_numbers<[1], [0], [0], [1], [0, 0, 1, 1], [], []>, precision = #tpu.contract_precision<fp32>} : vector<8x4xf32>, vector<4x128xf32>, vector<8x128xf32> -> vector<8x128xf32>
    %c0_3 = arith.constant 0 : index
    %c0_4 = arith.constant 0 : index
    %3 = vector.load %arg3[%c0_3, %c0_4] : memref<1x128xf32, #tpu.memory_space<vmem>>, vector<1x128xf32>
    %4 = vector.broadcast %3 : vector<1x128xf32> to vector<8x128xf32>
    %5 = arith.mulf %2, %4 : vector<8x128xf32>
    %c0_5 = arith.constant 0 : index
    %c0_6 = arith.constant 0 : index
    %6 = vector.load %arg4[%c0_5, %c0_6] : memref<1x128xf32, #tpu.memory_space<vmem>>, vector<1x128xf32>
    %7 = vector.broadcast %6 : vector<1x128xf32> to vector<8x128xf32>
    %8 = arith.addf %5, %7 : vector<8x128xf32>
    %9 = math.sin %8 : vector<8x128xf32>
    %c0_7 = arith.constant 0 : index
    %c0_8 = arith.constant 0 : index
    %10 = vector.load %arg5[%c0_7, %c0_8] : memref<8x128xf32, #tpu.memory_space<vmem>>, vector<8x128xf32>
    tpu.vector_store %arg5[%c0_7, %c0_8], %9 {strides = array<i32>} : memref<8x128xf32, #tpu.memory_space<vmem>>, vector<8x128xf32>,
    return
  }
  func.func @transform_0(%arg0: i32) -> (i32, i32) {
    %c0_i32 = arith.constant 0 : i32
    %c0_i32_0 = arith.constant 0 : i32
    return %arg0, %c0_i32 : i32, i32
  }
  func.func @transform_1(%arg0: i32) -> (i32, i32) {
    %c0_i32 = arith.constant 0 : i32
    %c0_i32_0 = arith.constant 0 : i32
    %c0_i32_1 = arith.constant 0 : i32
    return %c0_i32, %c0_i32_0 : i32, i32
  }
  func.func @transform_2(%arg0: i32) -> (i32, i32) {
    %c0_i32 = arith.constant 0 : i32
    %c0_i32_0 = arith.constant 0 : i32
    %c0_i32_1 = arith.constant 0 : i32
    return %c0_i32, %c0_i32_0 : i32, i32
  }
  func.func @transform_3(%arg0: i32) -> (i32, i32) {
    %c0_i32 = arith.constant 0 : i32
    %c0_i32_0 = arith.constant 0 : i32
    %c0_i32_1 = arith.constant 0 : i32
    return %c0_i32, %c0_i32_0 : i32, i32
  }
  func.func @transform_4(%arg0: i32) -> (i32, i32) {
    %c0_i32 = arith.constant 0 : i32
    %c0_i32_0 = arith.constant 0 : i32
    return %arg0, %c0_i32 : i32, i32
  }
}

</mosaic_0001>

<llo_original>
// kernel: tpu_custom_call.1
$region0: #{tpu_custom_call.1}
  #allocation0 [shape = 'u32[]', space=smem, size = 0x4, offset = 0x4, fixed_abs, tag = 'smem constant byte address 0x4 - core index']
  #allocation1 [shape = 'u32[144,128]{1,0:T(1,128)}', space=vmem, size = 0x12000, scoped, tag = 'internal scratch']
  %s0 = inlined_call_operand.vmem [shape: f32[8,4], index: 0, kind: input, shape index: {}]
  %s1 = inlined_call_operand.vmem [shape: f32[4,128], index: 1, kind: input, shape index: {}]
  %s2 = inlined_call_operand.vmem [shape: f32[1,128], index: 2, kind: input, shape index: {}]
  %s3 = inlined_call_operand.vmem [shape: f32[1,128], index: 3, kind: input, shape index: {}]
  %s4 = inlined_call_operand.hbm [shape: f32[8,128], index: 4, kind: output, shape index: {}]
  %s5 = sld [smem:[#allocation0]]
  $region26: #{tpu_custom_call.1} parent=0
    _
  %s7 = ssub.s32 1, %s5
  %s8 = scalar_select 0, %s7, %s5
  $region1: #{tpu_custom_call.1} parent=0
    #allocation2 [shape = 'u8[4096]{0}', space=vmem, size = 0x1000, scoped, tag = 'output window, operand 0, single buffered']
    #allocation3 [shape = 's32[1]{0}', space=sflag, size = 0x4, scoped, tag = 'scoped memory for tpu_custom_call.1']
    %9 = vsyncpa [#allocation3], 0
    // Predicated region
    $region2: #{tpu_custom_call.1} parent=1 // pred_check
      _
    $region3: #{tpu_custom_call.1} parent=1 // pred_check_branch
      %11 = sbr.rel (0) target = $region5
    $region4: #{tpu_custom_call.1} parent=1 // pred_region
      _
    $region5: #{tpu_custom_call.1} parent=1 // pred_fallthru
      _
    // Predicated region
    $region6: #{tpu_custom_call.1} parent=1 // pred_check
      _
    $region7: #{tpu_custom_call.1} parent=1 // pred_check_branch
      %13 = sbr.rel (0) target = $region9
    $region8: #{tpu_custom_call.1} parent=1 // pred_region
      _
    $region9: #{tpu_custom_call.1} parent=1 // pred_fallthru
      _
    // Predicated region
    $region10: #{tpu_custom_call.1} parent=1 // pred_check
      _
    $region11: #{tpu_custom_call.1} parent=1 // pred_check_branch
      %15 = sbr.rel (0) target = $region13
    $region12: #{tpu_custom_call.1} parent=1 // pred_region
      _
    $region13: #{tpu_custom_call.1} parent=1 // pred_fallthru
      _
    // Predicated region
    $region14: #{tpu_custom_call.1} parent=1 // pred_check
      _
    $region15: #{tpu_custom_call.1} parent=1 // pred_check_branch
      %17 = sbr.rel (0) target = $region17
    $region16: #{tpu_custom_call.1} parent=1 // pred_region
      _
    $region17: #{tpu_custom_call.1} parent=1 // pred_fallthru
      _
    %v18 = vld [vmem:[%s0] sm:$0xff]
    %v19 = vld [vmem:[%s1] sm:$0xf]
    %vm20 = vcmask 31744
    %v22 = vsel %vm20, %v18, 0
    %vm24 = vcmask 1043456
    %v26 = vsel %vm24, %v19, 0
    %28 = vmatprep.subr.mxu0 0.0
    %v29 = vand.u32 %v26, 4294901760
    %30 = vmatpush1.msra.mxu0 %v29
    %31 = vmatprep.subr.mxu0 0.0
    %32 = vmatpush1.msra.mxu0 0.0
    %33 = vmatprep.subr.mxu0 0.0
    %34 = vmatpush1.msra.mxu0 0.0
    %35 = vmatprep.subr.mxu0 0.0
    %36 = vmatpush1.msra.mxu0 0.0
    %37 = vmatprep.subr.mxu0 0.0
    %38 = vmatpush1.msra.mxu0 0.0
    %39 = vmatprep.subr.mxu0 0.0
    %40 = vmatpush1.msra.mxu0 0.0
    %41 = vmatprep.subr.mxu0 0.0
    %42 = vmatpush1.msra.mxu0 0.0
    %43 = vmatprep.subr.mxu0 0.0
    %44 = vmatpush1.msra.mxu0 0.0
    %45 = vmatprep.subr.mxu0 0.0
    %46 = vmatpush1.msra.mxu0 0.0
    %47 = vmatprep.subr.mxu0 0.0
    %48 = vmatpush1.msra.mxu0 0.0
    %49 = vmatprep.subr.mxu0 0.0
    %50 = vmatpush1.msra.mxu0 0.0
    %51 = vmatprep.subr.mxu0 0.0
    %52 = vmatpush1.msra.mxu0 0.0
    %53 = vmatprep.subr.mxu0 0.0
    %54 = vmatpush1.msra.mxu0 0.0
    %55 = vmatprep.subr.mxu0 0.0
    %56 = vmatpush1.msra.mxu0 0.0
    %57 = vmatprep.subr.mxu0 0.0
    %58 = vmatpush1.msra.mxu0 0.0
    %59 = vmatprep.subr.mxu0 0.0
    %60 = vmatpush1.msra.mxu0 0.0
    %61 = vmatprep.subr.mxu0 0.0
    %62 = vmatpush1.msra.mxu0 0.0
    %63 = vmatprep.subr.mxu0 0.0
    %64 = vmatpush1.msra.mxu0 0.0
    %65 = vmatprep.subr.mxu0 0.0
    %66 = vmatpush1.msra.mxu0 0.0
    %67 = vmatprep.subr.mxu0 0.0
    %68 = vmatpush1.msra.mxu0 0.0
    %69 = vmatprep.subr.mxu0 0.0
    %70 = vmatpush1.msra.mxu0 0.0
    %71 = vmatprep.subr.mxu0 0.0
    %72 = vmatpush1.msra.mxu0 0.0
    %73 = vmatprep.subr.mxu0 0.0
    %74 = vmatpush1.msra.mxu0 0.0
    %75 = vmatprep.subr.mxu0 0.0
    %76 = vmatpush1.msra.mxu0 0.0
    %77 = vmatprep.subr.mxu0 0.0
    %78 = vmatpush1.msra.mxu0 0.0
    %79 = vmatprep.subr.mxu0 0.0
    %80 = vmatpush1.msra.mxu0 0.0
    %81 = vmatprep.subr.mxu0 0.0
    %82 = vmatpush1.msra.mxu0 0.0
    %83 = vmatprep.subr.mxu0 0.0
    %84 = vmatpush1.msra.mxu0 0.0
    %85 = vmatprep.subr.mxu0 0.0
    %86 = vmatpush1.msra.mxu0 0.0
    %87 = vmatprep.subr.mxu0 0.0
    %88 = vmatpush1.msra.mxu0 0.0
    %89 = vmatprep.subr.mxu0 0.0
    %90 = vmatpush1.msra.mxu0 0.0
    %91 = vmatprep.subr.mxu0 0.0
    %92 = vmatpush1.msra.mxu0 0.0
    %93 = vmatprep.mubr.f32.mxu0 0.0
    %v94 = vand.u32 %v22, 4294901760
    %v95 = vsub.f32 %v22, %v94
    %v96 = vand.u32 %v95, 4294901760
    %v97 = vsub.f32 %v95, %v96
    %v98 = vand.u32 %v97, 4294901760
    %99 = vmatmul.mubr.f32.gmra.mrb[0].mxu0 %v98
    %v100 = vpop.f32.mrb[0].mxu0
    %v101 = vadd.f32 0.0, %v100
    %v102 = vpop.f32.mrb[0].mxu0
    %103 = vdwg.mxu0
    %104 = vmatprep.subr.mxu0 0.0
    %v105 = vand.u32 %v26, 4294901760
    %v106 = vsub.f32 %v26, %v105
    %v107 = vand.u32 %v106, 4294901760
    %v108 = vsub.f32 %v106, %v107
    %v109 = vand.u32 %v108, 4294901760
    %110 = vmatpush1.msra.mxu0 %v109
    %111 = vmatprep.subr.mxu0 0.0
    %112 = vmatpush1.msra.mxu0 0.0
    %113 = vmatprep.subr.mxu0 0.0
    %114 = vmatpush1.msra.mxu0 0.0
    %115 = vmatprep.subr.mxu0 0.0
    %116 = vmatpush1.msra.mxu0 0.0
    %117 = vmatprep.subr.mxu0 0.0
    %118 = vmatpush1.msra.mxu0 0.0
    %119 = vmatprep.subr.mxu0 0.0
    %120 = vmatpush1.msra.mxu0 0.0
    %121 = vmatprep.subr.mxu0 0.0
    %122 = vmatpush1.msra.mxu0 0.0
    %123 = vmatprep.subr.mxu0 0.0
    %124 = vmatpush1.msra.mxu0 0.0
    %125 = vmatprep.subr.mxu0 0.0
    %126 = vmatpush1.msra.mxu0 0.0
    %127 = vmatprep.subr.mxu0 0.0
    %128 = vmatpush1.msra.mxu0 0.0
    %129 = vmatprep.subr.mxu0 0.0
    %130 = vmatpush1.msra.mxu0 0.0
    %131 = vmatprep.subr.mxu0 0.0
    %132 = vmatpush1.msra.mxu0 0.0
    %133 = vmatprep.subr.mxu0 0.0
    %134 = vmatpush1.msra.mxu0 0.0
    %135 = vmatprep.subr.mxu0 0.0
    %136 = vmatpush1.msra.mxu0 0.0
    %137 = vmatprep.subr.mxu0 0.0
    %138 = vmatpush1.msra.mxu0 0.0
    %139 = vmatprep.subr.mxu0 0.0
    %140 = vmatpush1.msra.mxu0 0.0
    %141 = vmatprep.subr.mxu0 0.0
    %142 = vmatpush1.msra.mxu0 0.0
    %143 = vmatprep.subr.mxu0 0.0
    %144 = vmatpush1.msra.mxu0 0.0
    %145 = vmatprep.subr.mxu0 0.0
    %146 = vmatpush1.msra.mxu0 0.0
    %147 = vmatprep.subr.mxu0 0.0
    %148 = vmatpush1.msra.mxu0 0.0
    %149 = vmatprep.subr.mxu0 0.0
    %150 = vmatpush1.msra.mxu0 0.0
    %151 = vmatprep.subr.mxu0 0.0
    %152 = vmatpush1.msra.mxu0 0.0
    %153 = vmatprep.subr.mxu0 0.0
    %154 = vmatpush1.msra.mxu0 0.0
    %155 = vmatprep.subr.mxu0 0.0
    %156 = vmatpush1.msra.mxu0 0.0
    %157 = vmatprep.subr.mxu0 0.0
    %158 = vmatpush1.msra.mxu0 0.0
    %159 = vmatprep.subr.mxu0 0.0
    %160 = vmatpush1.msra.mxu0 0.0
    %161 = vmatprep.subr.mxu0 0.0
    %162 = vmatpush1.msra.mxu0 0.0
    %163 = vmatprep.subr.mxu0 0.0
    %164 = vmatpush1.msra.mxu0 0.0
    %165 = vmatprep.subr.mxu0 0.0
    %166 = vmatpush1.msra.mxu0 0.0
    %167 = vmatprep.subr.mxu0 0.0
    %168 = vmatpush1.msra.mxu0 0.0
    %169 = vmatprep.subr.mxu0 0.0
    %170 = vmatpush1.msra.mxu0 0.0
    %171 = vmatprep.subr.mxu0 0.0
    %172 = vmatpush1.msra.mxu0 0.0
    %173 = vmatprep.mubr.f32.mxu0 0.0
    %v174 = vand.u32 %v22, 4294901760
    %175 = vmatmul.mubr.f32.gmra.mrb[0].mxu0 %v174
    %v176 = vpop.f32.mrb[0].mxu0
    %v177 = vadd.f32 %v101, %v176
    %v178 = vpop.f32.mrb[0].mxu0
    %179 = vdwg.mxu0
    %180 = vmatprep.subr.mxu0 0.0
    %v181 = vand.u32 %v26, 4294901760
    %v182 = vsub.f32 %v26, %v181
    %183 = vmatpush1.msra.mxu0 %v182
    %184 = vmatprep.subr.mxu0 0.0
    %185 = vmatpush1.msra.mxu0 0.0
    %186 = vmatprep.subr.mxu0 0.0
    %187 = vmatpush1.msra.mxu0 0.0
    %188 = vmatprep.subr.mxu0 0.0
    %189 = vmatpush1.msra.mxu0 0.0
    %190 = vmatprep.subr.mxu0 0.0
    %191 = vmatpush1.msra.mxu0 0.0
    %192 = vmatprep.subr.mxu0 0.0
    %193 = vmatpush1.msra.mxu0 0.0
    %194 = vmatprep.subr.mxu0 0.0
    %195 = vmatpush1.msra.mxu0 0.0
    %196 = vmatprep.subr.mxu0 0.0
    %197 = vmatpush1.msra.mxu0 0.0
    %198 = vmatprep.subr.mxu0 0.0
    %199 = vmatpush1.msra.mxu0 0.0
    %200 = vmatprep.subr.mxu0 0.0
    %201 = vmatpush1.msra.mxu0 0.0
    %202 = vmatprep.subr.mxu0 0.0
    %203 = vmatpush1.msra.mxu0 0.0
    %204 = vmatprep.subr.mxu0 0.0
    %205 = vmatpush1.msra.mxu0 0.0
    %206 = vmatprep.subr.mxu0 0.0
    %207 = vmatpush1.msra.mxu0 0.0
    %208 = vmatprep.subr.mxu0 0.0
    %209 = vmatpush1.msra.mxu0 0.0
    %210 = vmatprep.subr.mxu0 0.0
    %211 = vmatpush1.msra.mxu0 0.0
    %212 = vmatprep.subr.mxu0 0.0
    %213 = vmatpush1.msra.mxu0 0.0
    %214 = vmatprep.subr.mxu0 0.0
    %215 = vmatpush1.msra.mxu0 0.0
    %216 = vmatprep.subr.mxu0 0.0
    %217 = vmatpush1.msra.mxu0 0.0
    %218 = vmatprep.subr.mxu0 0.0
    %219 = vmatpush1.msra.mxu0 0.0
    %220 = vmatprep.subr.mxu0 0.0
    %221 = vmatpush1.msra.mxu0 0.0
    %222 = vmatprep.subr.mxu0 0.0
    %223 = vmatpush1.msra.mxu0 0.0
    %224 = vmatprep.subr.mxu0 0.0
    %225 = vmatpush1.msra.mxu0 0.0
    %226 = vmatprep.subr.mxu0 0.0
    %227 = vmatpush1.msra.mxu0 0.0
    %228 = vmatprep.subr.mxu0 0.0
    %229 = vmatpush1.msra.mxu0 0.0
    %230 = vmatprep.subr.mxu0 0.0
    %231 = vmatpush1.msra.mxu0 0.0
    %232 = vmatprep.subr.mxu0 0.0
    %233 = vmatpush1.msra.mxu0 0.0
    %234 = vmatprep.subr.mxu0 0.0
    %235 = vmatpush1.msra.mxu0 0.0
    %236 = vmatprep.subr.mxu0 0.0
    %237 = vmatpush1.msra.mxu0 0.0
    %238 = vmatprep.subr.mxu0 0.0
    %239 = vmatpush1.msra.mxu0 0.0
    %240 = vmatprep.subr.mxu0 0.0
    %241 = vmatpush1.msra.mxu0 0.0
    %242 = vmatprep.subr.mxu0 0.0
    %243 = vmatpush1.msra.mxu0 0.0
    %244 = vmatprep.subr.mxu0 0.0
    %245 = vmatpush1.msra.mxu0 0.0
    %246 = vmatprep.mubr.f32.mxu0 0.0
    %v247 = vand.u32 %v22, 4294901760
    %v248 = vsub.f32 %v22, %v247
    %249 = vmatmul.mubr.f32.gmra.mrb[0].mxu0 %v248
    %v250 = vpop.f32.mrb[0].mxu0
    %v251 = vadd.f32 %v177, %v250
    %v252 = vpop.f32.mrb[0].mxu0
    %253 = vdwg.mxu0
    %254 = vmatprep.subr.mxu0 0.0
    %v255 = vand.u32 %v26, 4294901760
    %256 = vmatpush1.msra.mxu0 %v255
    %257 = vmatprep.subr.mxu0 0.0
    %258 = vmatpush1.msra.mxu0 0.0
    %259 = vmatprep.subr.mxu0 0.0
    %260 = vmatpush1.msra.mxu0 0.0
    %261 = vmatprep.subr.mxu0 0.0
    %262 = vmatpush1.msra.mxu0 0.0
    %263 = vmatprep.subr.mxu0 0.0
    %264 = vmatpush1.msra.mxu0 0.0
    %265 = vmatprep.subr.mxu0 0.0
    %266 = vmatpush1.msra.mxu0 0.0
    %267 = vmatprep.subr.mxu0 0.0
    %268 = vmatpush1.msra.mxu0 0.0
    %269 = vmatprep.subr.mxu0 0.0
    %270 = vmatpush1.msra.mxu0 0.0
    %271 = vmatprep.subr.mxu0 0.0
    %272 = vmatpush1.msra.mxu0 0.0
    %273 = vmatprep.subr.mxu0 0.0
    %274 = vmatpush1.msra.mxu0 0.0
    %275 = vmatprep.subr.mxu0 0.0
    %276 = vmatpush1.msra.mxu0 0.0
    %277 = vmatprep.subr.mxu0 0.0
    %278 = vmatpush1.msra.mxu0 0.0
    %279 = vmatprep.subr.mxu0 0.0
    %280 = vmatpush1.msra.mxu0 0.0
    %281 = vmatprep.subr.mxu0 0.0
    %282 = vmatpush1.msra.mxu0 0.0
    %283 = vmatprep.subr.mxu0 0.0
    %284 = vmatpush1.msra.mxu0 0.0
    %285 = vmatprep.subr.mxu0 0.0
    %286 = vmatpush1.msra.mxu0 0.0
    %287 = vmatprep.subr.mxu0 0.0
    %288 = vmatpush1.msra.mxu0 0.0
    %289 = vmatprep.subr.mxu0 0.0
    %290 = vmatpush1.msra.mxu0 0.0
    %291 = vmatprep.subr.mxu0 0.0
    %292 = vmatpush1.msra.mxu0 0.0
    %293 = vmatprep.subr.mxu0 0.0
    %294 = vmatpush1.msra.mxu0 0.0
    %295 = vmatprep.subr.mxu0 0.0
    %296 = vmatpush1.msra.mxu0 0.0
    %297 = vmatprep.subr.mxu0 0.0
    %298 = vmatpush1.msra.mxu0 0.0
    %299 = vmatprep.subr.mxu0 0.0
    %300 = vmatpush1.msra.mxu0 0.0
    %301 = vmatprep.subr.mxu0 0.0
    %302 = vmatpush1.msra.mxu0 0.0
    %303 = vmatprep.subr.mxu0 0.0
    %304 = vmatpush1.msra.mxu0 0.0
    %305 = vmatprep.subr.mxu0 0.0
    %306 = vmatpush1.msra.mxu0 0.0
    %307 = vmatprep.subr.mxu0 0.0
    %308 = vmatpush1.msra.mxu0 0.0
    %309 = vmatprep.subr.mxu0 0.0
    %310 = vmatpush1.msra.mxu0 0.0
    %311 = vmatprep.subr.mxu0 0.0
    %312 = vmatpush1.msra.mxu0 0.0
    %313 = vmatprep.subr.mxu0 0.0
    %314 = vmatpush1.msra.mxu0 0.0
    %315 = vmatprep.subr.mxu0 0.0
    %316 = vmatpush1.msra.mxu0 0.0
    %317 = vmatprep.subr.mxu0 0.0
    %318 = vmatpush1.msra.mxu0 0.0
    %319 = vmatprep.mubr.f32.mxu0 0.0
    %v320 = vand.u32 %v22, 4294901760
    %v321 = vsub.f32 %v22, %v320
    %v322 = vand.u32 %v321, 4294901760
    %323 = vmatmul.mubr.f32.gmra.mrb[0].mxu0 %v322
    %v324 = vpop.f32.mrb[0].mxu0
    %v325 = vadd.f32 %v251, %v324
    %v326 = vpop.f32.mrb[0].mxu0
    %327 = vdwg.mxu0
    %328 = vmatprep.subr.mxu0 0.0
    %v329 = vand.u32 %v26, 4294901760
    %v330 = vsub.f32 %v26, %v329
    %v331 = vand.u32 %v330, 4294901760
    %332 = vmatpush1.msra.mxu0 %v331
    %333 = vmatprep.subr.mxu0 0.0
    %334 = vmatpush1.msra.mxu0 0.0
    %335 = vmatprep.subr.mxu0 0.0
    %336 = vmatpush1.msra.mxu0 0.0
    %337 = vmatprep.subr.mxu0 0.0
    %338 = vmatpush1.msra.mxu0 0.0
    %339 = vmatprep.subr.mxu0 0.0
    %340 = vmatpush1.msra.mxu0 0.0
    %341 = vmatprep.subr.mxu0 0.0
    %342 = vmatpush1.msra.mxu0 0.0
    %343 = vmatprep.subr.mxu0 0.0
    %344 = vmatpush1.msra.mxu0 0.0
    %345 = vmatprep.subr.mxu0 0.0
    %346 = vmatpush1.msra.mxu0 0.0
    %347 = vmatprep.subr.mxu0 0.0
    %348 = vmatpush1.msra.mxu0 0.0
    %349 = vmatprep.subr.mxu0 0.0
    %350 = vmatpush1.msra.mxu0 0.0
    %351 = vmatprep.subr.mxu0 0.0
    %352 = vmatpush1.msra.mxu0 0.0
    %353 = vmatprep.subr.mxu0 0.0
    %354 = vmatpush1.msra.mxu0 0.0
    %355 = vmatprep.subr.mxu0 0.0
    %356 = vmatpush1.msra.mxu0 0.0
    %357 = vmatprep.subr.mxu0 0.0
    %358 = vmatpush1.msra.mxu0 0.0
    %359 = vmatprep.subr.mxu0 0.0
    %360 = vmatpush1.msra.mxu0 0.0
    %361 = vmatprep.subr.mxu0 0.0
    %362 = vmatpush1.msra.mxu0 0.0
    %363 = vmatprep.subr.mxu0 0.0
    %364 = vmatpush1.msra.mxu0 0.0
    %365 = vmatprep.subr.mxu0 0.0
    %366 = vmatpush1.msra.mxu0 0.0
    %367 = vmatprep.subr.mxu0 0.0
    %368 = vmatpush1.msra.mxu0 0.0
    %369 = vmatprep.subr.mxu0 0.0
    %370 = vmatpush1.msra.mxu0 0.0
    %371 = vmatprep.subr.mxu0 0.0
    %372 = vmatpush1.msra.mxu0 0.0
    %373 = vmatprep.subr.mxu0 0.0
    %374 = vmatpush1.msra.mxu0 0.0
    %375 = vmatprep.subr.mxu0 0.0
    %376 = vmatpush1.msra.mxu0 0.0
    %377 = vmatprep.subr.mxu0 0.0
    %378 = vmatpush1.msra.mxu0 0.0
    %379 = vmatprep.subr.mxu0 0.0
    %380 = vmatpush1.msra.mxu0 0.0
    %381 = vmatprep.subr.mxu0 0.0
    %382 = vmatpush1.msra.mxu0 0.0
    %383 = vmatprep.subr.mxu0 0.0
    %384 = vmatpush1.msra.mxu0 0.0
    %385 = vmatprep.subr.mxu0 0.0
    %386 = vmatpush1.msra.mxu0 0.0
    %387 = vmatprep.subr.mxu0 0.0
    %388 = vmatpush1.msra.mxu0 0.0
    %389 = vmatprep.subr.mxu0 0.0
    %390 = vmatpush1.msra.mxu0 0.0
    %391 = vmatprep.subr.mxu0 0.0
    %392 = vmatpush1.msra.mxu0 0.0
    %393 = vmatprep.subr.mxu0 0.0
    %394 = vmatpush1.msra.mxu0 0.0
    %395 = vmatprep.mubr.f32.mxu0 0.0
    %v396 = vand.u32 %v22, 4294901760
    %397 = vmatmul.mubr.f32.gmra.mrb[0].mxu0 %v396
    %v398 = vpop.f32.mrb[0].mxu0
    %v399 = vadd.f32 %v325, %v398
    %v400 = vpop.f32.mrb[0].mxu0
    %401 = vdwg.mxu0
    %402 = vmatprep.subr.mxu0 0.0
    %v403 = vand.u32 %v26, 4294901760
    %404 = vmatpush1.msra.mxu0 %v403
    %405 = vmatprep.subr.mxu0 0.0
    %406 = vmatpush1.msra.mxu0 0.0
    %407 = vmatprep.subr.mxu0 0.0
    %408 = vmatpush1.msra.mxu0 0.0
    %409 = vmatprep.subr.mxu0 0.0
    %410 = vmatpush1.msra.mxu0 0.0
    %411 = vmatprep.subr.mxu0 0.0
    %412 = vmatpush1.msra.mxu0 0.0
    %413 = vmatprep.subr.mxu0 0.0
    %414 = vmatpush1.msra.mxu0 0.0
    %415 = vmatprep.subr.mxu0 0.0
    %416 = vmatpush1.msra.mxu0 0.0
    %417 = vmatprep.subr.mxu0 0.0
    %418 = vmatpush1.msra.mxu0 0.0
    %419 = vmatprep.subr.mxu0 0.0
    %420 = vmatpush1.msra.mxu0 0.0
    %421 = vmatprep.subr.mxu0 0.0
    %422 = vmatpush1.msra.mxu0 0.0
    %423 = vmatprep.subr.mxu0 0.0
    %424 = vmatpush1.msra.mxu0 0.0
    %425 = vmatprep.subr.mxu0 0.0
    %426 = vmatpush1.msra.mxu0 0.0
    %427 = vmatprep.subr.mxu0 0.0
    %428 = vmatpush1.msra.mxu0 0.0
    %429 = vmatprep.subr.mxu0 0.0
    %430 = vmatpush1.msra.mxu0 0.0
    %431 = vmatprep.subr.mxu0 0.0
    %432 = vmatpush1.msra.mxu0 0.0
    %433 = vmatprep.subr.mxu0 0.0
    %434 = vmatpush1.msra.mxu0 0.0
    %435 = vmatprep.subr.mxu0 0.0
    %436 = vmatpush1.msra.mxu0 0.0
    %437 = vmatprep.subr.mxu0 0.0
    %438 = vmatpush1.msra.mxu0 0.0
    %439 = vmatprep.subr.mxu0 0.0
    %440 = vmatpush1.msra.mxu0 0.0
    %441 = vmatprep.subr.mxu0 0.0
    %442 = vmatpush1.msra.mxu0 0.0
    %443 = vmatprep.subr.mxu0 0.0
    %444 = vmatpush1.msra.mxu0 0.0
    %445 = vmatprep.subr.mxu0 0.0
    %446 = vmatpush1.msra.mxu0 0.0
    %447 = vmatprep.subr.mxu0 0.0
    %448 = vmatpush1.msra.mxu0 0.0
    %449 = vmatprep.subr.mxu0 0.0
    %450 = vmatpush1.msra.mxu0 0.0
    %451 = vmatprep.subr.mxu0 0.0
    %452 = vmatpush1.msra.mxu0 0.0
    %453 = vmatprep.subr.mxu0 0.0
    %454 = vmatpush1.msra.mxu0 0.0
    %455 = vmatprep.subr.mxu0 0.0
    %456 = vmatpush1.msra.mxu0 0.0
    %457 = vmatprep.subr.mxu0 0.0
    %458 = vmatpush1.msra.mxu0 0.0
    %459 = vmatprep.subr.mxu0 0.0
    %460 = vmatpush1.msra.mxu0 0.0
    %461 = vmatprep.subr.mxu0 0.0
    %462 = vmatpush1.msra.mxu0 0.0
    %463 = vmatprep.subr.mxu0 0.0
    %464 = vmatpush1.msra.mxu0 0.0
    %465 = vmatprep.subr.mxu0 0.0
    %466 = vmatpush1.msra.mxu0 0.0
    %467 = vmatprep.mubr.f32.mxu0 0.0
    %v468 = vand.u32 %v22, 4294901760
    %469 = vmatmul.mubr.f32.gmra.mrb[0].mxu0 %v468
    %v470 = vpop.f32.mrb[0].mxu0
    %v471 = vadd.f32 %v399, %v470
    %v472 = vpop.f32.mrb[0].mxu0
    %473 = vdwg.mxu0
    %v474 = vld [vmem:[%s2] sm:$0x1]
    %v476 = vlaneseq
    %v477 = vshrl.u32 %v476, 7
    %v478 = vsub.s32 0, %v477
    %v479 = vrot.slane %v474, %v478
    %v481 = vmul.f32 %v471, %v479
    %v482 = vld [vmem:[%s3] sm:$0x1]
    %v484 = vlaneseq
    %v485 = vshrl.u32 %v484, 7
    %v486 = vsub.s32 0, %v485
    %v487 = vrot.slane %v482, %v486
    %v489 = vadd.f32 %v481, %v487
    %v490 = vand.u32 2147483647, %v489
    %vm491 = vcmp.le.f32.partialorder %v490, 0.7853982
    %vm492 = vcmp.lt.s32.totalorder %v489, 0
    %v493 = vand.u32 %v489, 2139095040
    %v494 = vshrl.u32 %v493, 23
    %v495 = vsub.s32 %v494, 127
    %v496 = vand.u32 2147483647, %v489
    %v497 = vand.u32 %v496, 8388607
    %v498 = vor.u32 %v497, 8388608
    %v499 = vsub.s32 0, %v498
    %v500 = vadd.s32 %v495, 1
    %vm501 = vcmp.gt.s32.totalorder %v500, 0
    %v502 = vsel %vm501, %v500, 0
    %v503 = vshrl.u32 %v502, 5
    %v504 = vand.u32 %v502, 31
    %v505 = vsub.s32 32, %v504
    %v506 = vshrl.u32 683565275, %v505
    %v507 = vshll.u32 683565275, %v504
    %v508 = vshrl.u32 2475754826, %v505
    %v509 = vor.u32 %v507, %v508
    %v510 = vshll.u32 2475754826, %v504
    %v511 = vshrl.u32 2131351028, %v505
    %v512 = vor.u32 %v510, %v511
    %v513 = vshll.u32 2131351028, %v504
    %v514 = vshrl.u32 2102212464, %v505
    %v515 = vor.u32 %v513, %v514
    %v516 = vshll.u32 2102212464, %v504
    %v517 = vshrl.u32 920167782, %v505
    %v518 = vor.u32 %v516, %v517
    %v519 = vshll.u32 920167782, %v504
    %v520 = vshrl.u32 1326507024, %v505
    %v521 = vor.u32 %v519, %v520
    %vm522 = vcmp.lt.s32.totalorder %v503, 1
    %vm523 = vcmp.lt.s32.totalorder %v503, 2
    %vm524 = vcmp.lt.s32.totalorder %v503, 3
    %vm525 = vcmp.lt.s32.totalorder %v503, 4
    %v526 = vsel %vm522, %v506, %v509
    %v527 = vsel %vm525, %v515, 2102212464
    %v528 = vsel %vm524, %v512, %v527
    %v529 = vsel %vm523, %v526, %v528
    %v530 = vsel %vm522, %v509, %v512
    %v531 = vsel %vm525, %v518, 920167782
    %v532 = vsel %vm524, %v515, %v531
    %v533 = vsel %vm523, %v530, %v532
    %v534 = vsel %vm522, %v512, %v515
    %v535 = vsel %vm525, %v521, 1326507024
    %v536 = vsel %vm524, %v518, %v535
    %v537 = vsel %vm523, %v534, %v536
    %v538 = vshll.u32 %v498, 8
    %v539 = vmul.u32.u64.compose %v538, %v537
    %v540 = vextract.low.u32 %v539
    %v541 = vextract.high.u32 %v539
    %v542 = vmul.u32.u64.compose %v538, %v533
    %v543 = vextract.low.u32 %v542
    %v544 = vextract.high.u32 %v542
    %v545 = vmul.u32 %v538, %v529
    %v546 = vadd.s32 %v541, %v543
    %vm547 = vc.u32 %v541, %v543
    %v548 = vadd.s32 %v544, 1
    %v549 = vsel %vm547, %v548, %v544
    %v550 = vadd.s32 %v545, %v549
    %v551 = vadd.s32 %v550, 536870912
    %v552 = vshrl.u32 %v551, 30
    %v553 = vshll.u32 %v552, 30
    %v554 = vsub.s32 %v550, %v553
    %vm555 = vcmp.lt.s32.totalorder %v554, 0
    %v556 = vsub.s32 0, %v554
    %v557 = vsel %vm555, %v556, %v554
    %v558 = vclz %v557
    %v559 = vsub.s32 %v558, 2
    %vm560 = vcmp.gt.s32.totalorder 0, %v559
    %v561 = vsel %vm560, 0, %v559
    %v562 = vsub.s32 32, %v561
    %v563 = vshll.u32 %v554, %v561
    %v564 = vshrl.u32 %v546, %v562
    %v565 = vor.u32 %v563, %v564
    %v566 = vsub.s32 4294967266, %v561
    %v567 = vadd.s32 %v566, 127
    %v568 = vshll.u32 %v567, 23
    %v569 = vor.u32 4788187, %v568
    %v570 = vand.u32 2147483647, %v569
    %v572 = vcvt.s32.f32 %v565
    %v573 = vmul.f32 %v572, %v570
    %v574 = vxor.u32 %v573, 2147483648
    %v575 = vsel %vm492, %v574, %v573
    %v576 = vsub.s32 4, %v552
    %v577 = vsel %vm492, %v576, %v552
    %v578 = vsel %vm491, %v489, %v575
    %v579 = vsel %vm491, 0, %v577
    %v580 = vcosq.f32.pop %v578
    %v581 = vsinq.f32.pop %v578
    %vm582 = vweird.f32 %v489
    %v583 = vadd.s32 %v579, 3
    %v584 = vand.u32 %v583, 3
    %vm585 = vcmp.lt.s32.totalorder %v584, 2
    %vm586 = vcmp.eq.s32.totalorder %v584, 0
    %v587 = vxor.u32 %v581, 2147483648
    %v588 = vsel %vm586, %v580, %v587
    %vm589 = vcmp.eq.s32.totalorder %v584, 2
    %v590 = vxor.u32 %v580, 2147483648
    %v591 = vsel %vm589, %v590, %v581
    %v592 = vsel %vm585, %v588, %v591
    %v593 = vsel %vm582, nan, %v592
    %594 = vst [vmem:[#allocation2] sm:$0xff] %v593
    // Predicated region
    $region18: #{tpu_custom_call.1} parent=1 // pred_check
      _
    $region19: #{tpu_custom_call.1} parent=1 // pred_check_branch
      %596 = sbr.rel (0) target = $region21
    $region20: #{tpu_custom_call.1} parent=1 // pred_region
      %s598 = ssub.s32 128, 128
      %599 = vsyncadd [#allocation3], %s598
      %s601 = sshll.u32 [#allocation2], 4
      %s602 = int_to_ptr.vmem [resolvable:$true] %s601
      %604 = dma.vmem_to_hbm [thread:$0]  %s602, 128, %s4, [#allocation3]
    $region21: #{tpu_custom_call.1} parent=1 // pred_fallthru
      _
    // Predicated region
    $region22: #{tpu_custom_call.1} parent=1 // pred_check
      _
    $region23: #{tpu_custom_call.1} parent=1 // pred_check_branch
      %606 = sbr.rel (0) target = $region25
    $region24: #{tpu_custom_call.1} parent=1 // pred_region
      %607 = dma.done [#allocation3], 128
    $region25: #{tpu_custom_call.1} parent=1 // pred_fallthru
      _
    %608 = vsyncpa [#allocation3], 1

</llo_original>
